<compile_context>
chip_gen: v6e
topology: v6e:2x2x1
jax: 0.10.0
libtpu: 0.0.40
codegen_flags: <defaults>
</compile_context>

<pallas_src>
import math

import jax
import jax.numpy as jnp
from jax.experimental import pallas as pl
from jax.experimental.pallas import tpu as pltpu


def _encoder_kernel(x_ref, p_ref, w_ref, o_ref):
    # x_ref : (TB, S*I)   lane-dense batch tile of flattened x
    # p_ref : (S*I, S*I)  P = kron(eye(S), prime_a @ ones(1, I))
    # w_ref : (S*I, H)    W_tiled = tile_S(scale * prime_b @ belly)
    # o_ref : (TB, H)     output tile
    x2 = x_ref[...]                                              # (TB, SI)

    # t_exp[b, s*I+j] = sum_i x[b,s,i] * a[i]   (per-sequence scalar,
    # broadcast along the I lanes of its group)  -- one MXU matmul.
    t_exp = jnp.dot(x2, p_ref[...], preferred_element_type=jnp.float32)

    # v[b, s*I+i] = t[b,s] * x[b,s,i]           -- one lane-dense VPU multiply.
    v = t_exp * x2

    # out[b,h] = sum_{s,i} v[b,s,i] * W[i,h]    -- one MXU matmul
    # (scale, prime_b and belly are pre-fused into W_tiled).
    o_ref[...] = jnp.dot(
        v, w_ref[...], preferred_element_type=jnp.float32
    ).astype(o_ref.dtype)


def linear_encoder_converter(x, prime_a, prime_b, belly, *, sequence_scale):
    B, S, I = x.shape
    Ia, one = prime_a.shape
    Ib, H = prime_b.shape
    assert Ia == I and Ib == I and one == 1 and belly.shape == (H, H)

    SI = S * I

    # Free, contiguous view: put S*I on the lane axis.
    x2 = x.reshape(B, SI).astype(jnp.float32)

    # Pre-fused operands (plain jnp, outside pallas_call).
    w = (sequence_scale * (prime_b @ belly)).astype(jnp.float32)      # (I, H)
    w_tiled = jnp.tile(w, (S, 1))                                     # (SI, H)
    p = jnp.kron(
        jnp.eye(S, dtype=jnp.float32),
        prime_a.astype(jnp.float32) @ jnp.ones((1, I), jnp.float32),
    )                                                                 # (SI, SI)

    # ---- batch tile from a VMEM byte budget (target ~4 MiB of x per step) ----
    row_bytes = SI * 4
    target_tile_bytes = 4 * 1024 * 1024
    tb_budget = max(8, (target_tile_bytes // row_bytes) // 8 * 8)
    if B <= 8:
        # Single full-batch block (block dims == full array dims satisfies the
        # (8,128) rule without padding).
        TB = B
    else:
        # Multiple of 8 (sublane constraint), >= 2 grid steps when possible so
        # both TensorCores on v7x get fed, capped by the VMEM budget.
        half = ((pl.cdiv(B, 2) + 7) // 8) * 8
        TB = max(8, min(tb_budget, half))
    grid = (pl.cdiv(B, TB),)

    out = pl.pallas_call(
        _encoder_kernel,
        out_shape=jax.ShapeDtypeStruct((B, H), jnp.float32),
        grid=grid,
        in_specs=[
            pl.BlockSpec((TB, SI), lambda b: (b, 0)),   # x batch tile (lane-dense)
            pl.BlockSpec((SI, SI), lambda b: (0, 0)),   # P (resident)
            pl.BlockSpec((SI, H), lambda b: (0, 0)),    # W_tiled (resident)
        ],
        out_specs=pl.BlockSpec((TB, H), lambda b: (b, 0)),
        compiler_params=pltpu.CompilerParams(
            dimension_semantics=("parallel",),
            vmem_limit_bytes=48 * 1024 * 1024,
        ),
    )(x2, p, w_tiled)

    return out  # (B, HIDDEN)


def _reference(x, prime_a, prime_b, belly, *, sequence_scale):
    # Mirrors the PyTorch forward exactly (un-fused ordering).
    g = jnp.einsum("bsi,bsj->bij", x, x)
    y = jnp.einsum("bij,jk->bik", g, prime_a)[..., 0] * sequence_scale
    z = y @ prime_b
    return z @ belly


if __name__ == "__main__":
    # Small, module-consistent shapes.
    B = 2
    SEQUENCE_SIZE = 8
    INFORMATION_SIZE = 4
    HIDDEN_BELLY_SIZE = 32

    sequence_scale = 1.0 / math.sqrt(SEQUENCE_SIZE)

    key = jax.random.PRNGKey(0)
    k_x, k_a, k_b, k_belly = jax.random.split(key, 4)

    x = jax.random.uniform(k_x, (B, SEQUENCE_SIZE, INFORMATION_SIZE), jnp.float32)
    prime_a = jax.random.uniform(k_a, (INFORMATION_SIZE, 1), jnp.float32)
    prime_b = jax.random.uniform(
        k_b, (INFORMATION_SIZE, HIDDEN_BELLY_SIZE), jnp.float32
    )
    belly = jax.random.uniform(
        k_belly, (HIDDEN_BELLY_SIZE, HIDDEN_BELLY_SIZE), jnp.float32
    )

    out = linear_encoder_converter(
        x, prime_a, prime_b, belly, sequence_scale=sequence_scale
    )
    out = jax.block_until_ready(out)

    ref = _reference(x, prime_a, prime_b, belly, sequence_scale=sequence_scale)
    assert out.shape == (B, HIDDEN_BELLY_SIZE)
    assert jnp.allclose(out, ref, rtol=1e-3, atol=1e-3)

    print("KERNEL_OK")
</pallas_src>

<mosaic_0001>
module attributes {stable_mosaic.version = 11 : i64} {
  func.func @_encoder_kernel(%arg0: i32, %arg1: memref<2x32xf32, #tpu.memory_space<vmem>>, %arg2: memref<32x32xf32, #tpu.memory_space<vmem>>, %arg3: memref<32x32xf32, #tpu.memory_space<vmem>>, %arg4: memref<2x32xf32, #tpu.memory_space<vmem>>) attributes {dimension_semantics = [#tpu.dimension_semantics<parallel>], iteration_bounds = array<i64: 1>, scalar_prefetch = 0 : i64, scratch_operands = 0 : i64, tpu.core_type = #tpu.core_type<tc>, window_params = [{transform_indices = @transform_0, window_bounds = array<i64: 2, 32>}, {pipeline_mode = #tpu.pipeline_mode<synchronous>, transform_indices = @transform_1, window_bounds = array<i64: 32, 32>}, {pipeline_mode = #tpu.pipeline_mode<synchronous>, transform_indices = @transform_2, window_bounds = array<i64: 32, 32>}, {transform_indices = @transform_3, window_bounds = array<i64: 2, 32>}]} {
    %c0 = arith.constant 0 : index
    %c0_0 = arith.constant 0 : index
    %0 = vector.load %arg1[%c0, %c0_0] : memref<2x32xf32, #tpu.memory_space<vmem>>, vector<2x32xf32>
    %c0_1 = arith.constant 0 : index
    %c0_2 = arith.constant 0 : index
    %1 = vector.load %arg2[%c0_1, %c0_2] : memref<32x32xf32, #tpu.memory_space<vmem>>, vector<32x32xf32>
    %cst = arith.constant dense<0.000000e+00> : vector<2x32xf32>
    %2 = tpu.matmul %0, %1, %cst {dimension_numbers = #tpu.dot_dimension_numbers<[1], [0], [0], [1], [0, 0, 1, 1], [], []>} : vector<2x32xf32>, vector<32x32xf32>, vector<2x32xf32> -> vector<2x32xf32>
    %3 = arith.mulf %2, %0 : vector<2x32xf32>
    %c0_3 = arith.constant 0 : index
    %c0_4 = arith.constant 0 : index
    %4 = vector.load %arg3[%c0_3, %c0_4] : memref<32x32xf32, #tpu.memory_space<vmem>>, vector<32x32xf32>
    %cst_5 = arith.constant dense<0.000000e+00> : vector<2x32xf32>
    %5 = tpu.matmul %3, %4, %cst_5 {dimension_numbers = #tpu.dot_dimension_numbers<[1], [0], [0], [1], [0, 0, 1, 1], [], []>} : vector<2x32xf32>, vector<32x32xf32>, vector<2x32xf32> -> vector<2x32xf32>
    %c0_6 = arith.constant 0 : index
    %c0_7 = arith.constant 0 : index
    %6 = vector.load %arg4[%c0_6, %c0_7] : memref<2x32xf32, #tpu.memory_space<vmem>>, vector<2x32xf32>
    tpu.vector_store %arg4[%c0_6, %c0_7], %5 {strides = array<i32>} : memref<2x32xf32, #tpu.memory_space<vmem>>, vector<2x32xf32>,
    return
  }
  func.func @transform_0(%arg0: i32) -> (i32, i32) {
    %c0_i32 = arith.constant 0 : i32
    %c0_i32_0 = arith.constant 0 : i32
    return %arg0, %c0_i32 : i32, i32
  }
  func.func @transform_1(%arg0: i32) -> (i32, i32) {
    %c0_i32 = arith.constant 0 : i32
    %c0_i32_0 = arith.constant 0 : i32
    %c0_i32_1 = arith.constant 0 : i32
    return %c0_i32, %c0_i32_0 : i32, i32
  }
  func.func @transform_2(%arg0: i32) -> (i32, i32) {
    %c0_i32 = arith.constant 0 : i32
    %c0_i32_0 = arith.constant 0 : i32
    %c0_i32_1 = arith.constant 0 : i32
    return %c0_i32, %c0_i32_0 : i32, i32
  }
  func.func @transform_3(%arg0: i32) -> (i32, i32) {
    %c0_i32 = arith.constant 0 : i32
    %c0_i32_0 = arith.constant 0 : i32
    return %arg0, %c0_i32 : i32, i32
  }
}

</mosaic_0001>

<llo_original>
// kernel: tpu_custom_call.1
$region0: #{tpu_custom_call.1}
  #allocation0 [shape = 'u32[]', space=smem, size = 0x4, offset = 0x4, fixed_abs, tag = 'smem constant byte address 0x4 - core index']
  #allocation1 [shape = 'u32[144,128]{1,0:T(1,128)}', space=vmem, size = 0x12000, scoped, tag = 'internal scratch']
  %s0 = inlined_call_operand.hbm [shape: f32[2,32], index: 0, kind: input, shape index: {}]
  %s1 = inlined_call_operand.hbm [shape: f32[32,32], index: 1, kind: input, shape index: {}]
  %s2 = inlined_call_operand.hbm [shape: f32[32,32], index: 2, kind: input, shape index: {}]
  %s3 = inlined_call_operand.hbm [shape: f32[2,32], index: 3, kind: output, shape index: {}]
  %s4 = sld [smem:[#allocation0]]
  $region34: #{tpu_custom_call.1} parent=0
    _
  %s6 = ssub.s32 1, %s4
  %s7 = scalar_select 0, %s6, %s4
  $region1: #{tpu_custom_call.1} parent=0
    #allocation2 [shape = 'u8[1024]{0}', space=vmem, size = 0x400, scoped, tag = 'input window, operand 0, single buffered']
    #allocation3 [shape = 's32[1]{0}', space=sflag, size = 0x4, scoped, tag = 'scoped memory for tpu_custom_call.1']
    #allocation4 [shape = 's32[1]{0}', space=sflag, size = 0x4, scoped, tag = 'scoped memory for tpu_custom_call.1']
    #allocation5 [shape = 'u8[16384]{0}', space=vmem, size = 0x4000, scoped, tag = 'input window, operand 1, single buffered']
    #allocation6 [shape = 's32[1]{0}', space=sflag, size = 0x4, scoped, tag = 'scoped memory for tpu_custom_call.1']
    #allocation7 [shape = 'u8[16384]{0}', space=vmem, size = 0x4000, scoped, tag = 'input window, operand 2, single buffered']
    #allocation8 [shape = 'u8[1024]{0}', space=vmem, size = 0x400, scoped, tag = 'output window, operand 0, single buffered']
    %8 = vsyncpa [#allocation3], 0
    %9 = vsyncpa [#allocation6], 0
    %10 = vsyncpa [#allocation4], 0
    // Predicated region
    $region2: #{tpu_custom_call.1} parent=1 // pred_check
      _
    $region3: #{tpu_custom_call.1} parent=1 // pred_check_branch
      %12 = sbr.rel (0) target = $region5
    $region4: #{tpu_custom_call.1} parent=1 // pred_region
      %s14 = ssub.s32 32, 32
      %15 = vsyncadd [#allocation3], %s14
      %s17 = sshll.u32 [#allocation2], 4
      %s18 = int_to_ptr.vmem [resolvable:$true] %s17
      %20 = dma.hbm_to_vmem [thread:$0]  %s0, 32, %s18, [#allocation3]
    $region5: #{tpu_custom_call.1} parent=1 // pred_fallthru
      _
    // Predicated region
    $region6: #{tpu_custom_call.1} parent=1 // pred_check
      _
    $region7: #{tpu_custom_call.1} parent=1 // pred_check_branch
      %22 = sbr.rel (0) target = $region9
    $region8: #{tpu_custom_call.1} parent=1 // pred_region
      %s24 = ssub.s32 512, 512
      %25 = vsyncadd [#allocation6], %s24
      %s26 = sshll.u32 [#allocation5], 4
      %s27 = int_to_ptr.vmem [resolvable:$true] %s26
      %32 = dma.hbm_to_vmem [thread:$0]  %s1, 512, %s27, [#allocation6], 128, 128, 8
    $region9: #{tpu_custom_call.1} parent=1 // pred_fallthru
      _
    // Predicated region
    $region10: #{tpu_custom_call.1} parent=1 // pred_check
      _
    $region11: #{tpu_custom_call.1} parent=1 // pred_check_branch
      %34 = sbr.rel (0) target = $region13
    $region12: #{tpu_custom_call.1} parent=1 // pred_region
      %s36 = ssub.s32 512, 512
      %37 = vsyncadd [#allocation6], %s36
      %s38 = sshll.u32 [#allocation7], 4
      %s39 = int_to_ptr.vmem [resolvable:$true] %s38
      %44 = dma.hbm_to_vmem [thread:$0]  %s2, 512, %s39, [#allocation6], 128, 128, 8
    $region13: #{tpu_custom_call.1} parent=1 // pred_fallthru
      _
    // Predicated region
    $region14: #{tpu_custom_call.1} parent=1 // pred_check
      _
    $region15: #{tpu_custom_call.1} parent=1 // pred_check_branch
      %46 = sbr.rel (0) target = $region17
    $region16: #{tpu_custom_call.1} parent=1 // pred_region
      %47 = dma.done [#allocation3], 32
    $region17: #{tpu_custom_call.1} parent=1 // pred_fallthru
      _
    // Predicated region
    $region18: #{tpu_custom_call.1} parent=1 // pred_check
      _
    $region19: #{tpu_custom_call.1} parent=1 // pred_check_branch
      %49 = sbr.rel (0) target = $region21
    $region20: #{tpu_custom_call.1} parent=1 // pred_region
      %50 = dma.done [#allocation6], 512
    $region21: #{tpu_custom_call.1} parent=1 // pred_fallthru
      _
    // Predicated region
    $region22: #{tpu_custom_call.1} parent=1 // pred_check
      _
    $region23: #{tpu_custom_call.1} parent=1 // pred_check_branch
      %52 = sbr.rel (0) target = $region25
    $region24: #{tpu_custom_call.1} parent=1 // pred_region
      %53 = dma.done [#allocation6], 512
    $region25: #{tpu_custom_call.1} parent=1 // pred_fallthru
      _
    %v54 = vld [vmem:[#allocation2] sm:$0x3]
    %v55 = vld [vmem:[#allocation5] sm:$0xff]
    %v56 = vld [vmem:[#allocation5 + $0x8] sm:$0xff]
    %v57 = vld [vmem:[#allocation5 + $0x10] sm:$0xff]
    %v58 = vld [vmem:[#allocation5 + $0x18] sm:$0xff]
    %vm59 = vcmask 261120
    %v61 = vsel %vm59, %v54, 0
    %63 = vmatprep.subr.mxu0 0.0
    %64 = vmatpush1.msra.mxu0 0.0
    %65 = vmatprep.subr.mxu0 0.0
    %66 = vmatpush1.msra.mxu0 0.0
    %67 = vmatprep.subr.mxu0 0.0
    %68 = vmatpush1.msra.mxu0 0.0
    %69 = vmatprep.subr.mxu0 0.0
    %70 = vmatpush1.msra.mxu0 0.0
    %71 = vmatprep.subr.mxu0 0.0
    %72 = vmatpush1.msra.mxu0 0.0
    %73 = vmatprep.subr.mxu0 0.0
    %74 = vmatpush1.msra.mxu0 0.0
    %75 = vmatprep.subr.mxu0 0.0
    %76 = vmatpush1.msra.mxu0 0.0
    %77 = vmatprep.subr.mxu0 0.0
    %78 = vmatpush1.msra.mxu0 0.0
    %79 = vmatprep.subr.mxu0 0.0
    %80 = vmatpush1.msra.mxu0 0.0
    %81 = vmatprep.subr.mxu0 0.0
    %82 = vmatpush1.msra.mxu0 0.0
    %83 = vmatprep.subr.mxu0 0.0
    %84 = vmatpush1.msra.mxu0 0.0
    %85 = vmatprep.subr.mxu0 0.0
    %86 = vmatpush1.msra.mxu0 0.0
    %87 = vmatprep.subr.mxu0 0.0
    %88 = vmatpush1.msra.mxu0 %v58
    %89 = vmatprep.subr.mxu0 0.0
    %90 = vmatpush1.msra.mxu0 %v57
    %91 = vmatprep.subr.mxu0 0.0
    %92 = vmatpush1.msra.mxu0 %v56
    %93 = vmatprep.subr.mxu0 0.0
    %94 = vmatpush1.msra.mxu0 %v55
    %95 = vmatprep.subr.mxu0 0.0
    %96 = vmatpush2.msra.mxu0 0.0
    %97 = vmatprep.subr.mxu0 0.0
    %98 = vmatpush2.msra.mxu0 0.0
    %99 = vmatprep.subr.mxu0 0.0
    %100 = vmatpush2.msra.mxu0 0.0
    %101 = vmatprep.subr.mxu0 0.0
    %102 = vmatpush2.msra.mxu0 0.0
    %103 = vmatprep.subr.mxu0 0.0
    %104 = vmatpush2.msra.mxu0 0.0
    %105 = vmatprep.subr.mxu0 0.0
    %106 = vmatpush2.msra.mxu0 0.0
    %107 = vmatprep.subr.mxu0 0.0
    %108 = vmatpush2.msra.mxu0 0.0
    %109 = vmatprep.subr.mxu0 0.0
    %110 = vmatpush2.msra.mxu0 0.0
    %111 = vmatprep.subr.mxu0 0.0
    %112 = vmatpush2.msra.mxu0 0.0
    %113 = vmatprep.subr.mxu0 0.0
    %114 = vmatpush2.msra.mxu0 0.0
    %115 = vmatprep.subr.mxu0 0.0
    %116 = vmatpush2.msra.mxu0 0.0
    %117 = vmatprep.subr.mxu0 0.0
    %118 = vmatpush2.msra.mxu0 0.0
    %119 = vmatprep.subr.mxu0 0.0
    %120 = vmatpush2.msra.mxu0 0.0
    %121 = vmatprep.subr.mxu0 0.0
    %122 = vmatpush2.msra.mxu0 0.0
    %123 = vmatprep.subr.mxu0 0.0
    %124 = vmatpush2.msra.mxu0 0.0
    %125 = vmatprep.subr.mxu0 0.0
    %126 = vmatpush2.msra.mxu0 0.0
    %127 = vmatprep.mubr.f32.mxu0 0.0
    %128 = vmatmul.mubr.f32.gmra.mxu0 %v61
    %v129 = vpop.f32.mrf.mxu0
    %v130 = vadd.f32 0.0, %v129
    %v131 = vpop.f32.mrf.mxu0
    %132 = vdwg.mxu0
    %v133 = vmul.f32 %v130, %v54
    %v134 = vld [vmem:[#allocation7] sm:$0xff]
    %v135 = vld [vmem:[#allocation7 + $0x8] sm:$0xff]
    %v136 = vld [vmem:[#allocation7 + $0x10] sm:$0xff]
    %v137 = vld [vmem:[#allocation7 + $0x18] sm:$0xff]
    %v139 = vsel %vm59, %v133, 0
    %141 = vmatprep.subr.mxu0 0.0
    %142 = vmatpush1.msra.mxu0 0.0
    %143 = vmatprep.subr.mxu0 0.0
    %144 = vmatpush1.msra.mxu0 0.0
    %145 = vmatprep.subr.mxu0 0.0
    %146 = vmatpush1.msra.mxu0 0.0
    %147 = vmatprep.subr.mxu0 0.0
    %148 = vmatpush1.msra.mxu0 0.0
    %149 = vmatprep.subr.mxu0 0.0
    %150 = vmatpush1.msra.mxu0 0.0
    %151 = vmatprep.subr.mxu0 0.0
    %152 = vmatpush1.msra.mxu0 0.0
    %153 = vmatprep.subr.mxu0 0.0
    %154 = vmatpush1.msra.mxu0 0.0
    %155 = vmatprep.subr.mxu0 0.0
    %156 = vmatpush1.msra.mxu0 0.0
    %157 = vmatprep.subr.mxu0 0.0
    %158 = vmatpush1.msra.mxu0 0.0
    %159 = vmatprep.subr.mxu0 0.0
    %160 = vmatpush1.msra.mxu0 0.0
    %161 = vmatprep.subr.mxu0 0.0
    %162 = vmatpush1.msra.mxu0 0.0
    %163 = vmatprep.subr.mxu0 0.0
    %164 = vmatpush1.msra.mxu0 0.0
    %165 = vmatprep.subr.mxu0 0.0
    %166 = vmatpush1.msra.mxu0 %v137
    %167 = vmatprep.subr.mxu0 0.0
    %168 = vmatpush1.msra.mxu0 %v136
    %169 = vmatprep.subr.mxu0 0.0
    %170 = vmatpush1.msra.mxu0 %v135
    %171 = vmatprep.subr.mxu0 0.0
    %172 = vmatpush1.msra.mxu0 %v134
    %173 = vmatprep.subr.mxu0 0.0
    %174 = vmatpush2.msra.mxu0 0.0
    %175 = vmatprep.subr.mxu0 0.0
    %176 = vmatpush2.msra.mxu0 0.0
    %177 = vmatprep.subr.mxu0 0.0
    %178 = vmatpush2.msra.mxu0 0.0
    %179 = vmatprep.subr.mxu0 0.0
    %180 = vmatpush2.msra.mxu0 0.0
    %181 = vmatprep.subr.mxu0 0.0
    %182 = vmatpush2.msra.mxu0 0.0
    %183 = vmatprep.subr.mxu0 0.0
    %184 = vmatpush2.msra.mxu0 0.0
    %185 = vmatprep.subr.mxu0 0.0
    %186 = vmatpush2.msra.mxu0 0.0
    %187 = vmatprep.subr.mxu0 0.0
    %188 = vmatpush2.msra.mxu0 0.0
    %189 = vmatprep.subr.mxu0 0.0
    %190 = vmatpush2.msra.mxu0 0.0
    %191 = vmatprep.subr.mxu0 0.0
    %192 = vmatpush2.msra.mxu0 0.0
    %193 = vmatprep.subr.mxu0 0.0
    %194 = vmatpush2.msra.mxu0 0.0
    %195 = vmatprep.subr.mxu0 0.0
    %196 = vmatpush2.msra.mxu0 0.0
    %197 = vmatprep.subr.mxu0 0.0
    %198 = vmatpush2.msra.mxu0 0.0
    %199 = vmatprep.subr.mxu0 0.0
    %200 = vmatpush2.msra.mxu0 0.0
    %201 = vmatprep.subr.mxu0 0.0
    %202 = vmatpush2.msra.mxu0 0.0
    %203 = vmatprep.subr.mxu0 0.0
    %204 = vmatpush2.msra.mxu0 0.0
    %205 = vmatprep.mubr.f32.mxu0 0.0
    %206 = vmatmul.mubr.f32.gmra.mxu0 %v139
    %v207 = vpop.f32.mrf.mxu0
    %v208 = vadd.f32 0.0, %v207
    %v209 = vpop.f32.mrf.mxu0
    %210 = vdwg.mxu0
    %vm211 = vcmask 254976
    %212 = vst.msk [vmem:[#allocation8] sm:$0x3] %vm211, %v208
    // Predicated region
    $region26: #{tpu_custom_call.1} parent=1 // pred_check
      _
    $region27: #{tpu_custom_call.1} parent=1 // pred_check_branch
      %214 = sbr.rel (0) target = $region29
    $region28: #{tpu_custom_call.1} parent=1 // pred_region
      %s216 = ssub.s32 32, 32
      %217 = vsyncadd [#allocation4], %s216
      %s219 = sshll.u32 [#allocation8], 4
      %s220 = int_to_ptr.vmem [resolvable:$true] %s219
      %222 = dma.vmem_to_hbm [thread:$0]  %s220, 32, %s3, [#allocation4]
    $region29: #{tpu_custom_call.1} parent=1 // pred_fallthru
      _
    // Predicated region
    $region30: #{tpu_custom_call.1} parent=1 // pred_check
      _
    $region31: #{tpu_custom_call.1} parent=1 // pred_check_branch
      %224 = sbr.rel (0) target = $region33
    $region32: #{tpu_custom_call.1} parent=1 // pred_region
      %225 = dma.done [#allocation4], 32
    $region33: #{tpu_custom_call.1} parent=1 // pred_fallthru
      _
    %226 = vsyncpa [#allocation3], 1
    %227 = vsyncpa [#allocation6], 1
    %228 = vsyncpa [#allocation4], 1

</llo_original>
